<compile_context>
chip_gen: v6e
topology: v6e:2x2x1
jax: 0.10.0
libtpu: 0.0.40
codegen_flags: <defaults>
</compile_context>

<pallas_src>
import functools

import jax
import jax.numpy as jnp
from jax import lax
from jax.experimental import pallas as pl
from jax.experimental.pallas import tpu as pltpu

_LANE = 128
_CHUNK = 512                       # lanes per inner-loop iteration (4 vreg groups)
_RESIDENT_W_BYTES = 4 * 1024 * 1024
_UNROLL_CHUNK_LIMIT = 8            # <= this many chunks -> static Python unroll


def _round_up(x, m):
    return ((x + m - 1) // m) * m


def _sublane(dtype):
    # sub-32-bit dtypes pack 2/4 rows per sublane -> round batch tiles to 16/32
    return 32 // jnp.dtype(dtype).itemsize


def _hint(x, m):
    # alignment hint only for traced values; static ints pass through
    return x if isinstance(x, int) else pl.multiple_of(x, m)


def _mv_kernel(f_ref, w_ref, o_ref, acc_ref, *,
               tk, f_total, n_chunks, resident, need_mask):
    """Grid step (i, k): accumulate one feature tile into a lane-dense scratch."""
    k = pl.program_id(1)

    @pl.when(k == 0)
    def _():
        acc_ref[...] = jnp.zeros_like(acc_ref)

    lane = None
    if need_mask:
        lane = lax.broadcasted_iota(jnp.int32, (1, _LANE), 1)

    tile_start = k * tk                      # global feature offset of this tile
    w_base = tile_start if resident else 0   # resident weight is indexed globally

    def do_chunk(j, acc):
        base = _hint(j * _CHUNK, _CHUNK)
        for s_i in range(_CHUNK // _LANE):
            off = base + s_i * _LANE
            f_sl = f_ref[:, pl.ds(_hint(off, _LANE), _LANE)].astype(jnp.float32)
            w_sl = w_ref[:, pl.ds(_hint(w_base + off, _LANE), _LANE)].astype(jnp.float32)
            p = f_sl * w_sl                  # (tb, 128) VPU multiply
            if need_mask:
                # Mask the ragged feature tail: OOB part of a partial input
                # block holds stale VMEM data (NaN * 0 would still be NaN).
                valid = (tile_start + off + lane) < f_total
                p = jnp.where(valid, p, 0.0)
            acc = acc + p
        return acc

    acc0 = jnp.zeros(acc_ref.shape, jnp.float32)
    if n_chunks <= _UNROLL_CHUNK_LIMIT:
        part = acc0
        for j in range(n_chunks):            # static unroll for short loops
            part = do_chunk(j, part)
    else:
        part = lax.fori_loop(0, n_chunks, do_chunk, acc0)

    acc_ref[...] += part                      # one scratch RMW per grid step

    @pl.when(k == pl.num_programs(1) - 1)
    def _():
        # Single cross-lane reduce + narrow store only in the epilogue.
        o_ref[...] = jnp.sum(acc_ref[...], axis=-1,
                             keepdims=True).astype(o_ref.dtype)


def discriminator_mv_pallas(features, dw, *,
                            feature_tile_bytes=8 * 1024 * 1024,
                            batch_tile=128):
    """out[b] = sum_f features[b, f] * dw[f]   (torch.mv semantics)."""
    B, F = features.shape
    assert dw.shape == (F,)
    out_dtype = jnp.result_type(features.dtype, dw.dtype)
    itemsize = jnp.dtype(features.dtype).itemsize
    w_itemsize = jnp.dtype(dw.dtype).itemsize

    feature_tile_bytes = min(max(feature_tile_bytes, 64 * 1024), 16 * 1024 * 1024)

    # --- batch tiling: dtype-aware sublane rounding; ragged tail via cdiv grid
    s = _sublane(features.dtype)
    if B <= s:
        nbt = 1
    else:
        # >= 2 batch tiles so the "parallel" axis can use both TCs on v7x.
        nbt = max(2, pl.cdiv(B, batch_tile))
    tb = _round_up(pl.cdiv(B, nbt), s)        # pad waste <= s-1 rows
    grid_b = pl.cdiv(B, tb)

    # --- feature tiling: large lane-dense tiles, ragged tail masked in-kernel
    tk = feature_tile_bytes // (tb * itemsize)
    tk = max(_CHUNK, (tk // _CHUNK) * _CHUNK)
    tk = min(tk, _round_up(F, _CHUNK))
    grid_k = pl.cdiv(F, tk)
    F_pad = grid_k * tk
    need_mask = (F_pad != F)
    n_chunks = tk // _CHUNK

    # Only the tiny weight row is padded; features stream unpadded from HBM.
    w_row = dw.reshape(1, F)
    if F_pad != F:
        w_row = jnp.pad(w_row, ((0, 0), (0, F_pad - F)))

    resident = F_pad * w_itemsize <= _RESIDENT_W_BYTES
    if resident:
        # Constant block index -> DMA'd once, stays VMEM-resident for the
        # whole grid; sliced in-kernel at global offsets.
        w_spec = pl.BlockSpec((1, F_pad), lambda i, k: (0, 0))
    else:
        w_spec = pl.BlockSpec((1, tk), lambda i, k: (0, k))

    kernel = functools.partial(_mv_kernel, tk=tk, f_total=F,
                               n_chunks=n_chunks, resident=resident,
                               need_mask=need_mask)

    cost = pl.CostEstimate(
        flops=2 * B * F,
        transcendentals=0,
        bytes_accessed=(B * F * itemsize + F_pad * w_itemsize
                        + B * jnp.dtype(out_dtype).itemsize),
    )

    out = pl.pallas_call(
        kernel,
        out_shape=jax.ShapeDtypeStruct((B, 1), out_dtype),
        grid_spec=pltpu.PrefetchScalarGridSpec(
            num_scalar_prefetch=0,
            grid=(grid_b, grid_k),
            in_specs=[
                pl.BlockSpec((tb, tk), lambda i, k: (i, k)),   # feature tile
                w_spec,                                        # weight row
            ],
            out_specs=pl.BlockSpec((tb, 1), lambda i, k: (i, 0)),
            scratch_shapes=[pltpu.VMEM((tb, _LANE), jnp.float32)],
        ),
        compiler_params=pltpu.CompilerParams(
            # batch axis shards across TensorCores (v7x); feature axis is the
            # serial reduction.
            dimension_semantics=("parallel", "arbitrary"),
            # 2 x 8 MiB double-buffered tiles + resident weight + scratch;
            # stays under v7x's 64 MiB physical VMEM, overrides smaller
            # scoped defaults on v5e/v6e/v7x.
            vmem_limit_bytes=48 * 1024 * 1024,
        ),
        cost_estimate=cost,
    )(features, w_row)

    return out.reshape(B)


def discriminator_forward(features, dw, *, use_pallas=None, **tile_kwargs):
    if use_pallas is None:
        # Tiny mat-vecs: kernel launch + pipeline prologue dominates; let XLA
        # fuse the dot instead.
        use_pallas = features.size * jnp.dtype(features.dtype).itemsize >= (1 << 20)
    if not use_pallas:
        return features @ dw
    return discriminator_mv_pallas(features, dw, **tile_kwargs)


class DiscriminatorModelA:
    """JAX/Pallas re-implementation of the PyTorch DiscriminatorModelA forward.

    Parameters mirror __init__: Dw ~ randn(Features) / sqrt(Features).
    """

    def __init__(self, features_dim, key):
        self.Features = features_dim
        w = jax.random.normal(key, (features_dim,), dtype=jnp.float32)
        self.Dw = w / jnp.sqrt(jnp.float32(features_dim))

    def project_params(self):
        self.Dw = self.Dw / jnp.linalg.norm(self.Dw)

    def forward(self, x, is_feature=True, use_pallas=None):
        if not is_feature:
            # TODO(synk): wphshift2d (wavelet phase harmonic feature extractor)
            # is an external library op not defined in the module source; only
            # the is_feature=True mat-vec path is implemented.
            raise NotImplementedError("wphshift2d feature extraction not available")
        return discriminator_forward(x, self.Dw, use_pallas=use_pallas)


if __name__ == "__main__":
    key = jax.random.PRNGKey(0)
    k_feat, k_w = jax.random.split(key)

    # Small shapes consistent with the module (batch of images -> feature
    # vectors of length total_nbcov; deliberately NOT a multiple of 128).
    B, FEATURES = 4, 3000
    features = jax.random.normal(k_feat, (B, FEATURES), dtype=jnp.float32)

    model = DiscriminatorModelA(FEATURES, k_w)
    out = model.forward(features, is_feature=True, use_pallas=True)  # force Pallas
    out = jax.block_until_ready(out)

    ref = features @ model.Dw
    assert out.shape == (B,)
    assert jnp.allclose(out, ref, atol=5e-4, rtol=5e-4), (out, ref)

    # Second check: ragged batch tail, multi-tile feature reduction and the
    # masked last feature tile (deliberately tiny tiles to exercise the grid).
    B2, F2 = 20, 5000
    k2a, k2b = jax.random.split(jax.random.PRNGKey(1))
    f2 = jax.random.normal(k2a, (B2, F2), dtype=jnp.float32)
    w2 = jax.random.normal(k2b, (F2,), dtype=jnp.float32) / jnp.sqrt(jnp.float32(F2))
    out2 = jax.block_until_ready(
        discriminator_mv_pallas(f2, w2, feature_tile_bytes=64 * 1024, batch_tile=8))
    ref2 = f2 @ w2
    assert out2.shape == (B2,)
    assert jnp.allclose(out2, ref2, atol=5e-4, rtol=5e-4), (out2, ref2)

    print("KERNEL_OK")
</pallas_src>

<mosaic_0001>
module attributes {stable_mosaic.version = 11 : i64} {
  func.func @_mv_kernel(%arg0: i32, %arg1: i32, %arg2: memref<8x3072xf32, #tpu.memory_space<vmem>>, %arg3: memref<1x3072xf32, #tpu.memory_space<vmem>>, %arg4: memref<8x1xf32, #tpu.memory_space<vmem>>, %arg5: memref<8x128xf32, #tpu.memory_space<vmem>>) attributes {dimension_semantics = [#tpu.dimension_semantics<parallel>, #tpu.dimension_semantics<arbitrary>], iteration_bounds = array<i64: 1, 1>, scalar_prefetch = 0 : i64, scratch_operands = 1 : i64, tpu.core_type = #tpu.core_type<tc>, window_params = [{transform_indices = @transform_0, window_bounds = array<i64: 8, 3072>}, {pipeline_mode = #tpu.pipeline_mode<synchronous>, transform_indices = @transform_1, window_bounds = array<i64: 1, 3072>}, {transform_indices = @transform_2, window_bounds = array<i64: 8, 1>}]} {
    %c0_i32 = arith.constant 0 : i32
    %0 = arith.cmpi eq, %arg1, %c0_i32 : i32
    %1 = arith.extui %0 : i1 to i32
    %c0_i32_0 = arith.constant 0 : i32
    %2 = arith.cmpi ne, %1, %c0_i32_0 : i32
    scf.if %2 {
      %cst_127 = arith.constant 0.000000e+00 : f32
      %420 = vector.broadcast %cst_127 : f32 to vector<8x128xf32>
      %c0_128 = arith.constant 0 : index
      %c0_129 = arith.constant 0 : index
      %421 = vector.load %arg5[%c0_128, %c0_129] : memref<8x128xf32, #tpu.memory_space<vmem>>, vector<8x128xf32>
      tpu.vector_store %arg5[%c0_128, %c0_129], %420 {strides = array<i32>} : memref<8x128xf32, #tpu.memory_space<vmem>>, vector<8x128xf32>,
    } else {
    }
    %3 = tpu.iota {dimensions = array<i32: 1>} : vector<1x128xi32>
    %c3072_i32 = arith.constant 3072 : i32
    %4 = arith.muli %arg1, %c3072_i32 : i32
    %cst = arith.constant 0.000000e+00 : f32
    %5 = vector.broadcast %cst : f32 to vector<8x128xf32>
    %c0 = arith.constant 0 : index
    %c0_1 = arith.constant 0 : index
    %6 = vector.load %arg2[%c0, %c0_1] : memref<8x3072xf32, #tpu.memory_space<vmem>>, vector<8x128xf32>
    %c0_i32_2 = arith.constant 0 : i32
    %7 = arith.addi %4, %c0_i32_2 : i32
    %8 = tpu.assume_multiple %7, 128 : i32
    %c0_3 = arith.constant 0 : index
    %9 = arith.index_cast %8 : i32 to index
    %10 = vector.load %arg3[%c0_3, %9] : memref<1x3072xf32, #tpu.memory_space<vmem>>, vector<1x128xf32>
    %11 = vector.broadcast %10 : vector<1x128xf32> to vector<8x128xf32>
    %12 = arith.mulf %6, %11 : vector<8x128xf32>
    %c0_i32_4 = arith.constant 0 : i32
    %13 = arith.addi %4, %c0_i32_4 : i32
    %14 = vector.broadcast %13 : i32 to vector<1x128xi32>
    %15 = arith.addi %14, %3 : vector<1x128xi32>
    %c3000_i32 = arith.constant 3000 : i32
    %16 = vector.broadcast %c3000_i32 : i32 to vector<1x128xi32>
    %17 = arith.cmpi slt, %15, %16 : vector<1x128xi32>
    %cst_5 = arith.constant 0.000000e+00 : f32
    %18 = vector.shape_cast %17 : vector<1x128xi1> to vector<1x128xi1>
    %19 = vector.broadcast %18 : vector<1x128xi1> to vector<8x128xi1>
    %20 = vector.broadcast %cst_5 : f32 to vector<8x128xf32>
    %21 = arith.select %19, %12, %20 : vector<8x128xi1>, vector<8x128xf32>
    %22 = arith.addf %5, %21 : vector<8x128xf32>
    %c0_6 = arith.constant 0 : index
    %c128 = arith.constant 128 : index
    %23 = vector.load %arg2[%c0_6, %c128] : memref<8x3072xf32, #tpu.memory_space<vmem>>, vector<8x128xf32>
    %c128_i32 = arith.constant 128 : i32
    %24 = arith.addi %4, %c128_i32 : i32
    %25 = tpu.assume_multiple %24, 128 : i32
    %c0_7 = arith.constant 0 : index
    %26 = arith.index_cast %25 : i32 to index
    %27 = vector.load %arg3[%c0_7, %26] : memref<1x3072xf32, #tpu.memory_space<vmem>>, vector<1x128xf32>
    %28 = vector.broadcast %27 : vector<1x128xf32> to vector<8x128xf32>
    %29 = arith.mulf %23, %28 : vector<8x128xf32>
    %c128_i32_8 = arith.constant 128 : i32
    %30 = arith.addi %4, %c128_i32_8 : i32
    %31 = vector.broadcast %30 : i32 to vector<1x128xi32>
    %32 = arith.addi %31, %3 : vector<1x128xi32>
    %c3000_i32_9 = arith.constant 3000 : i32
    %33 = vector.broadcast %c3000_i32_9 : i32 to vector<1x128xi32>
    %34 = arith.cmpi slt, %32, %33 : vector<1x128xi32>
    %cst_10 = arith.constant 0.000000e+00 : f32
    %35 = vector.shape_cast %34 : vector<1x128xi1> to vector<1x128xi1>
    %36 = vector.broadcast %35 : vector<1x128xi1> to vector<8x128xi1>
    %37 = vector.broadcast %cst_10 : f32 to vector<8x128xf32>
    %38 = arith.select %36, %29, %37 : vector<8x128xi1>, vector<8x128xf32>
    %39 = arith.addf %22, %38 : vector<8x128xf32>
    %c0_11 = arith.constant 0 : index
    %c256 = arith.constant 256 : index
    %40 = vector.load %arg2[%c0_11, %c256] : memref<8x3072xf32, #tpu.memory_space<vmem>>, vector<8x128xf32>
    %c256_i32 = arith.constant 256 : i32
    %41 = arith.addi %4, %c256_i32 : i32
    %42 = tpu.assume_multiple %41, 128 : i32
    %c0_12 = arith.constant 0 : index
    %43 = arith.index_cast %42 : i32 to index
    %44 = vector.load %arg3[%c0_12, %43] : memref<1x3072xf32, #tpu.memory_space<vmem>>, vector<1x128xf32>
    %45 = vector.broadcast %44 : vector<1x128xf32> to vector<8x128xf32>
    %46 = arith.mulf %40, %45 : vector<8x128xf32>
    %c256_i32_13 = arith.constant 256 : i32
    %47 = arith.addi %4, %c256_i32_13 : i32
    %48 = vector.broadcast %47 : i32 to vector<1x128xi32>
    %49 = arith.addi %48, %3 : vector<1x128xi32>
    %c3000_i32_14 = arith.constant 3000 : i32
    %50 = vector.broadcast %c3000_i32_14 : i32 to vector<1x128xi32>
    %51 = arith.cmpi slt, %49, %50 : vector<1x128xi32>
    %cst_15 = arith.constant 0.000000e+00 : f32
    %52 = vector.shape_cast %51 : vector<1x128xi1> to vector<1x128xi1>
    %53 = vector.broadcast %52 : vector<1x128xi1> to vector<8x128xi1>
    %54 = vector.broadcast %cst_15 : f32 to vector<8x128xf32>
    %55 = arith.select %53, %46, %54 : vector<8x128xi1>, vector<8x128xf32>
    %56 = arith.addf %39, %55 : vector<8x128xf32>
    %c0_16 = arith.constant 0 : index
    %c384 = arith.constant 384 : index
    %57 = vector.load %arg2[%c0_16, %c384] : memref<8x3072xf32, #tpu.memory_space<vmem>>, vector<8x128xf32>
    %c384_i32 = arith.constant 384 : i32
    %58 = arith.addi %4, %c384_i32 : i32
    %59 = tpu.assume_multiple %58, 128 : i32
    %c0_17 = arith.constant 0 : index
    %60 = arith.index_cast %59 : i32 to index
    %61 = vector.load %arg3[%c0_17, %60] : memref<1x3072xf32, #tpu.memory_space<vmem>>, vector<1x128xf32>
    %62 = vector.broadcast %61 : vector<1x128xf32> to vector<8x128xf32>
    %63 = arith.mulf %57, %62 : vector<8x128xf32>
    %c384_i32_18 = arith.constant 384 : i32
    %64 = arith.addi %4, %c384_i32_18 : i32
    %65 = vector.broadcast %64 : i32 to vector<1x128xi32>
    %66 = arith.addi %65, %3 : vector<1x128xi32>
    %c3000_i32_19 = arith.constant 3000 : i32
    %67 = vector.broadcast %c3000_i32_19 : i32 to vector<1x128xi32>
    %68 = arith.cmpi slt, %66, %67 : vector<1x128xi32>
    %cst_20 = arith.constant 0.000000e+00 : f32
    %69 = vector.shape_cast %68 : vector<1x128xi1> to vector<1x128xi1>
    %70 = vector.broadcast %69 : vector<1x128xi1> to vector<8x128xi1>
    %71 = vector.broadcast %cst_20 : f32 to vector<8x128xf32>
    %72 = arith.select %70, %63, %71 : vector<8x128xi1>, vector<8x128xf32>
    %73 = arith.addf %56, %72 : vector<8x128xf32>
    %c0_21 = arith.constant 0 : index
    %c512 = arith.constant 512 : index
    %74 = vector.load %arg2[%c0_21, %c512] : memref<8x3072xf32, #tpu.memory_space<vmem>>, vector<8x128xf32>
    %c512_i32 = arith.constant 512 : i32
    %75 = arith.addi %4, %c512_i32 : i32
    %76 = tpu.assume_multiple %75, 128 : i32
    %c0_22 = arith.constant 0 : index
    %77 = arith.index_cast %76 : i32 to index
    %78 = vector.load %arg3[%c0_22, %77] : memref<1x3072xf32, #tpu.memory_space<vmem>>, vector<1x128xf32>
    %79 = vector.broadcast %78 : vector<1x128xf32> to vector<8x128xf32>
    %80 = arith.mulf %74, %79 : vector<8x128xf32>
    %c512_i32_23 = arith.constant 512 : i32
    %81 = arith.addi %4, %c512_i32_23 : i32
    %82 = vector.broadcast %81 : i32 to vector<1x128xi32>
    %83 = arith.addi %82, %3 : vector<1x128xi32>
    %c3000_i32_24 = arith.constant 3000 : i32
    %84 = vector.broadcast %c3000_i32_24 : i32 to vector<1x128xi32>
    %85 = arith.cmpi slt, %83, %84 : vector<1x128xi32>
    %cst_25 = arith.constant 0.000000e+00 : f32
    %86 = vector.shape_cast %85 : vector<1x128xi1> to vector<1x128xi1>
    %87 = vector.broadcast %86 : vector<1x128xi1> to vector<8x128xi1>
    %88 = vector.broadcast %cst_25 : f32 to vector<8x128xf32>
    %89 = arith.select %87, %80, %88 : vector<8x128xi1>, vector<8x128xf32>
    %90 = arith.addf %73, %89 : vector<8x128xf32>
    %c0_26 = arith.constant 0 : index
    %c640 = arith.constant 640 : index
    %91 = vector.load %arg2[%c0_26, %c640] : memref<8x3072xf32, #tpu.memory_space<vmem>>, vector<8x128xf32>
    %c640_i32 = arith.constant 640 : i32
    %92 = arith.addi %4, %c640_i32 : i32
    %93 = tpu.assume_multiple %92, 128 : i32
    %c0_27 = arith.constant 0 : index
    %94 = arith.index_cast %93 : i32 to index
    %95 = vector.load %arg3[%c0_27, %94] : memref<1x3072xf32, #tpu.memory_space<vmem>>, vector<1x128xf32>
    %96 = vector.broadcast %95 : vector<1x128xf32> to vector<8x128xf32>
    %97 = arith.mulf %91, %96 : vector<8x128xf32>
    %c640_i32_28 = arith.constant 640 : i32
    %98 = arith.addi %4, %c640_i32_28 : i32
    %99 = vector.broadcast %98 : i32 to vector<1x128xi32>
    %100 = arith.addi %99, %3 : vector<1x128xi32>
    %c3000_i32_29 = arith.constant 3000 : i32
    %101 = vector.broadcast %c3000_i32_29 : i32 to vector<1x128xi32>
    %102 = arith.cmpi slt, %100, %101 : vector<1x128xi32>
    %cst_30 = arith.constant 0.000000e+00 : f32
    %103 = vector.shape_cast %102 : vector<1x128xi1> to vector<1x128xi1>
    %104 = vector.broadcast %103 : vector<1x128xi1> to vector<8x128xi1>
    %105 = vector.broadcast %cst_30 : f32 to vector<8x128xf32>
    %106 = arith.select %104, %97, %105 : vector<8x128xi1>, vector<8x128xf32>
    %107 = arith.addf %90, %106 : vector<8x128xf32>
    %c0_31 = arith.constant 0 : index
    %c768 = arith.constant 768 : index
    %108 = vector.load %arg2[%c0_31, %c768] : memref<8x3072xf32, #tpu.memory_space<vmem>>, vector<8x128xf32>
    %c768_i32 = arith.constant 768 : i32
    %109 = arith.addi %4, %c768_i32 : i32
    %110 = tpu.assume_multiple %109, 128 : i32
    %c0_32 = arith.constant 0 : index
    %111 = arith.index_cast %110 : i32 to index
    %112 = vector.load %arg3[%c0_32, %111] : memref<1x3072xf32, #tpu.memory_space<vmem>>, vector<1x128xf32>
    %113 = vector.broadcast %112 : vector<1x128xf32> to vector<8x128xf32>
    %114 = arith.mulf %108, %113 : vector<8x128xf32>
    %c768_i32_33 = arith.constant 768 : i32
    %115 = arith.addi %4, %c768_i32_33 : i32
    %116 = vector.broadcast %115 : i32 to vector<1x128xi32>
    %117 = arith.addi %116, %3 : vector<1x128xi32>
    %c3000_i32_34 = arith.constant 3000 : i32
    %118 = vector.broadcast %c3000_i32_34 : i32 to vector<1x128xi32>
    %119 = arith.cmpi slt, %117, %118 : vector<1x128xi32>
    %cst_35 = arith.constant 0.000000e+00 : f32
    %120 = vector.shape_cast %119 : vector<1x128xi1> to vector<1x128xi1>
    %121 = vector.broadcast %120 : vector<1x128xi1> to vector<8x128xi1>
    %122 = vector.broadcast %cst_35 : f32 to vector<8x128xf32>
    %123 = arith.select %121, %114, %122 : vector<8x128xi1>, vector<8x128xf32>
    %124 = arith.addf %107, %123 : vector<8x128xf32>
    %c0_36 = arith.constant 0 : index
    %c896 = arith.constant 896 : index
    %125 = vector.load %arg2[%c0_36, %c896] : memref<8x3072xf32, #tpu.memory_space<vmem>>, vector<8x128xf32>
    %c896_i32 = arith.constant 896 : i32
    %126 = arith.addi %4, %c896_i32 : i32
    %127 = tpu.assume_multiple %126, 128 : i32
    %c0_37 = arith.constant 0 : index
    %128 = arith.index_cast %127 : i32 to index
    %129 = vector.load %arg3[%c0_37, %128] : memref<1x3072xf32, #tpu.memory_space<vmem>>, vector<1x128xf32>
    %130 = vector.broadcast %129 : vector<1x128xf32> to vector<8x128xf32>
    %131 = arith.mulf %125, %130 : vector<8x128xf32>
    %c896_i32_38 = arith.constant 896 : i32
    %132 = arith.addi %4, %c896_i32_38 : i32
    %133 = vector.broadcast %132 : i32 to vector<1x128xi32>
    %134 = arith.addi %133, %3 : vector<1x128xi32>
    %c3000_i32_39 = arith.constant 3000 : i32
    %135 = vector.broadcast %c3000_i32_39 : i32 to vector<1x128xi32>
    %136 = arith.cmpi slt, %134, %135 : vector<1x128xi32>
    %cst_40 = arith.constant 0.000000e+00 : f32
    %137 = vector.shape_cast %136 : vector<1x128xi1> to vector<1x128xi1>
    %138 = vector.broadcast %137 : vector<1x128xi1> to vector<8x128xi1>
    %139 = vector.broadcast %cst_40 : f32 to vector<8x128xf32>
    %140 = arith.select %138, %131, %139 : vector<8x128xi1>, vector<8x128xf32>
    %141 = arith.addf %124, %140 : vector<8x128xf32>
    %c0_41 = arith.constant 0 : index
    %c1024 = arith.constant 1024 : index
    %142 = vector.load %arg2[%c0_41, %c1024] : memref<8x3072xf32, #tpu.memory_space<vmem>>, vector<8x128xf32>
    %c1024_i32 = arith.constant 1024 : i32
    %143 = arith.addi %4, %c1024_i32 : i32
    %144 = tpu.assume_multiple %143, 128 : i32
    %c0_42 = arith.constant 0 : index
    %145 = arith.index_cast %144 : i32 to index
    %146 = vector.load %arg3[%c0_42, %145] : memref<1x3072xf32, #tpu.memory_space<vmem>>, vector<1x128xf32>
    %147 = vector.broadcast %146 : vector<1x128xf32> to vector<8x128xf32>
    %148 = arith.mulf %142, %147 : vector<8x128xf32>
    %c1024_i32_43 = arith.constant 1024 : i32
    %149 = arith.addi %4, %c1024_i32_43 : i32
    %150 = vector.broadcast %149 : i32 to vector<1x128xi32>
    %151 = arith.addi %150, %3 : vector<1x128xi32>
    %c3000_i32_44 = arith.constant 3000 : i32
    %152 = vector.broadcast %c3000_i32_44 : i32 to vector<1x128xi32>
    %153 = arith.cmpi slt, %151, %152 : vector<1x128xi32>
    %cst_45 = arith.constant 0.000000e+00 : f32
    %154 = vector.shape_cast %153 : vector<1x128xi1> to vector<1x128xi1>
    %155 = vector.broadcast %154 : vector<1x128xi1> to vector<8x128xi1>
    %156 = vector.broadcast %cst_45 : f32 to vector<8x128xf32>
    %157 = arith.select %155, %148, %156 : vector<8x128xi1>, vector<8x128xf32>
    %158 = arith.addf %141, %157 : vector<8x128xf32>
    %c0_46 = arith.constant 0 : index
    %c1152 = arith.constant 1152 : index
    %159 = vector.load %arg2[%c0_46, %c1152] : memref<8x3072xf32, #tpu.memory_space<vmem>>, vector<8x128xf32>
    %c1152_i32 = arith.constant 1152 : i32
    %160 = arith.addi %4, %c1152_i32 : i32
    %161 = tpu.assume_multiple %160, 128 : i32
    %c0_47 = arith.constant 0 : index
    %162 = arith.index_cast %161 : i32 to index
    %163 = vector.load %arg3[%c0_47, %162] : memref<1x3072xf32, #tpu.memory_space<vmem>>, vector<1x128xf32>
    %164 = vector.broadcast %163 : vector<1x128xf32> to vector<8x128xf32>
    %165 = arith.mulf %159, %164 : vector<8x128xf32>
    %c1152_i32_48 = arith.constant 1152 : i32
    %166 = arith.addi %4, %c1152_i32_48 : i32
    %167 = vector.broadcast %166 : i32 to vector<1x128xi32>
    %168 = arith.addi %167, %3 : vector<1x128xi32>
    %c3000_i32_49 = arith.constant 3000 : i32
    %169 = vector.broadcast %c3000_i32_49 : i32 to vector<1x128xi32>
    %170 = arith.cmpi slt, %168, %169 : vector<1x128xi32>
    %cst_50 = arith.constant 0.000000e+00 : f32
    %171 = vector.shape_cast %170 : vector<1x128xi1> to vector<1x128xi1>
    %172 = vector.broadcast %171 : vector<1x128xi1> to vector<8x128xi1>
    %173 = vector.broadcast %cst_50 : f32 to vector<8x128xf32>
    %174 = arith.select %172, %165, %173 : vector<8x128xi1>, vector<8x128xf32>
    %175 = arith.addf %158, %174 : vector<8x128xf32>
    %c0_51 = arith.constant 0 : index
    %c1280 = arith.constant 1280 : index
    %176 = vector.load %arg2[%c0_51, %c1280] : memref<8x3072xf32, #tpu.memory_space<vmem>>, vector<8x128xf32>
    %c1280_i32 = arith.constant 1280 : i32
    %177 = arith.addi %4, %c1280_i32 : i32
    %178 = tpu.assume_multiple %177, 128 : i32
    %c0_52 = arith.constant 0 : index
    %179 = arith.index_cast %178 : i32 to index
    %180 = vector.load %arg3[%c0_52, %179] : memref<1x3072xf32, #tpu.memory_space<vmem>>, vector<1x128xf32>
    %181 = vector.broadcast %180 : vector<1x128xf32> to vector<8x128xf32>
    %182 = arith.mulf %176, %181 : vector<8x128xf32>
    %c1280_i32_53 = arith.constant 1280 : i32
    %183 = arith.addi %4, %c1280_i32_53 : i32
    %184 = vector.broadcast %183 : i32 to vector<1x128xi32>
    %185 = arith.addi %184, %3 : vector<1x128xi32>
    %c3000_i32_54 = arith.constant 3000 : i32
    %186 = vector.broadcast %c3000_i32_54 : i32 to vector<1x128xi32>
    %187 = arith.cmpi slt, %185, %186 : vector<1x128xi32>
    %cst_55 = arith.constant 0.000000e+00 : f32
    %188 = vector.shape_cast %187 : vector<1x128xi1> to vector<1x128xi1>
    %189 = vector.broadcast %188 : vector<1x128xi1> to vector<8x128xi1>
    %190 = vector.broadcast %cst_55 : f32 to vector<8x128xf32>
    %191 = arith.select %189, %182, %190 : vector<8x128xi1>, vector<8x128xf32>
    %192 = arith.addf %175, %191 : vector<8x128xf32>
    %c0_56 = arith.constant 0 : index
    %c1408 = arith.constant 1408 : index
    %193 = vector.load %arg2[%c0_56, %c1408] : memref<8x3072xf32, #tpu.memory_space<vmem>>, vector<8x128xf32>
    %c1408_i32 = arith.constant 1408 : i32
    %194 = arith.addi %4, %c1408_i32 : i32
    %195 = tpu.assume_multiple %194, 128 : i32
    %c0_57 = arith.constant 0 : index
    %196 = arith.index_cast %195 : i32 to index
    %197 = vector.load %arg3[%c0_57, %196] : memref<1x3072xf32, #tpu.memory_space<vmem>>, vector<1x128xf32>
    %198 = vector.broadcast %197 : vector<1x128xf32> to vector<8x128xf32>
    %199 = arith.mulf %193, %198 : vector<8x128xf32>
    %c1408_i32_58 = arith.constant 1408 : i32
    %200 = arith.addi %4, %c1408_i32_58 : i32
    %201 = vector.broadcast %200 : i32 to vector<1x128xi32>
    %202 = arith.addi %201, %3 : vector<1x128xi32>
    %c3000_i32_59 = arith.constant 3000 : i32
    %203 = vector.broadcast %c3000_i32_59 : i32 to vector<1x128xi32>
    %204 = arith.cmpi slt, %202, %203 : vector<1x128xi32>
    %cst_60 = arith.constant 0.000000e+00 : f32
    %205 = vector.shape_cast %204 : vector<1x128xi1> to vector<1x128xi1>
    %206 = vector.broadcast %205 : vector<1x128xi1> to vector<8x128xi1>
    %207 = vector.broadcast %cst_60 : f32 to vector<8x128xf32>
    %208 = arith.select %206, %199, %207 : vector<8x128xi1>, vector<8x128xf32>
    %209 = arith.addf %192, %208 : vector<8x128xf32>
    %c0_61 = arith.constant 0 : index
    %c1536 = arith.constant 1536 : index
    %210 = vector.load %arg2[%c0_61, %c1536] : memref<8x3072xf32, #tpu.memory_space<vmem>>, vector<8x128xf32>
    %c1536_i32 = arith.constant 1536 : i32
    %211 = arith.addi %4, %c1536_i32 : i32
    %212 = tpu.assume_multiple %211, 128 : i32
    %c0_62 = arith.constant 0 : index
    %213 = arith.index_cast %212 : i32 to index
    %214 = vector.load %arg3[%c0_62, %213] : memref<1x3072xf32, #tpu.memory_space<vmem>>, vector<1x128xf32>
    %215 = vector.broadcast %214 : vector<1x128xf32> to vector<8x128xf32>
    %216 = arith.mulf %210, %215 : vector<8x128xf32>
    %c1536_i32_63 = arith.constant 1536 : i32
    %217 = arith.addi %4, %c1536_i32_63 : i32
    %218 = vector.broadcast %217 : i32 to vector<1x128xi32>
    %219 = arith.addi %218, %3 : vector<1x128xi32>
    %c3000_i32_64 = arith.constant 3000 : i32
    %220 = vector.broadcast %c3000_i32_64 : i32 to vector<1x128xi32>
    %221 = arith.cmpi slt, %219, %220 : vector<1x128xi32>
    %cst_65 = arith.constant 0.000000e+00 : f32
    %222 = vector.shape_cast %221 : vector<1x128xi1> to vector<1x128xi1>
    %223 = vector.broadcast %222 : vector<1x128xi1> to vector<8x128xi1>
    %224 = vector.broadcast %cst_65 : f32 to vector<8x128xf32>
    %225 = arith.select %223, %216, %224 : vector<8x128xi1>, vector<8x128xf32>
    %226 = arith.addf %209, %225 : vector<8x128xf32>
    %c0_66 = arith.constant 0 : index
    %c1664 = arith.constant 1664 : index
    %227 = vector.load %arg2[%c0_66, %c1664] : memref<8x3072xf32, #tpu.memory_space<vmem>>, vector<8x128xf32>
    %c1664_i32 = arith.constant 1664 : i32
    %228 = arith.addi %4, %c1664_i32 : i32
    %229 = tpu.assume_multiple %228, 128 : i32
    %c0_67 = arith.constant 0 : index
    %230 = arith.index_cast %229 : i32 to index
    %231 = vector.load %arg3[%c0_67, %230] : memref<1x3072xf32, #tpu.memory_space<vmem>>, vector<1x128xf32>
    %232 = vector.broadcast %231 : vector<1x128xf32> to vector<8x128xf32>
    %233 = arith.mulf %227, %232 : vector<8x128xf32>
    %c1664_i32_68 = arith.constant 1664 : i32
    %234 = arith.addi %4, %c1664_i32_68 : i32
    %235 = vector.broadcast %234 : i32 to vector<1x128xi32>
    %236 = arith.addi %235, %3 : vector<1x128xi32>
    %c3000_i32_69 = arith.constant 3000 : i32
    %237 = vector.broadcast %c3000_i32_69 : i32 to vector<1x128xi32>
    %238 = arith.cmpi slt, %236, %237 : vector<1x128xi32>
    %cst_70 = arith.constant 0.000000e+00 : f32
    %239 = vector.shape_cast %238 : vector<1x128xi1> to vector<1x128xi1>
    %240 = vector.broadcast %239 : vector<1x128xi1> to vector<8x128xi1>
    %241 = vector.broadcast %cst_70 : f32 to vector<8x128xf32>
    %242 = arith.select %240, %233, %241 : vector<8x128xi1>, vector<8x128xf32>
    %243 = arith.addf %226, %242 : vector<8x128xf32>
    %c0_71 = arith.constant 0 : index
    %c1792 = arith.constant 1792 : index
    %244 = vector.load %arg2[%c0_71, %c1792] : memref<8x3072xf32, #tpu.memory_space<vmem>>, vector<8x128xf32>
    %c1792_i32 = arith.constant 1792 : i32
    %245 = arith.addi %4, %c1792_i32 : i32
    %246 = tpu.assume_multiple %245, 128 : i32
    %c0_72 = arith.constant 0 : index
    %247 = arith.index_cast %246 : i32 to index
    %248 = vector.load %arg3[%c0_72, %247] : memref<1x3072xf32, #tpu.memory_space<vmem>>, vector<1x128xf32>
    %249 = vector.broadcast %248 : vector<1x128xf32> to vector<8x128xf32>
    %250 = arith.mulf %244, %249 : vector<8x128xf32>
    %c1792_i32_73 = arith.constant 1792 : i32
    %251 = arith.addi %4, %c1792_i32_73 : i32
    %252 = vector.broadcast %251 : i32 to vector<1x128xi32>
    %253 = arith.addi %252, %3 : vector<1x128xi32>
    %c3000_i32_74 = arith.constant 3000 : i32
    %254 = vector.broadcast %c3000_i32_74 : i32 to vector<1x128xi32>
    %255 = arith.cmpi slt, %253, %254 : vector<1x128xi32>
    %cst_75 = arith.constant 0.000000e+00 : f32
    %256 = vector.shape_cast %255 : vector<1x128xi1> to vector<1x128xi1>
    %257 = vector.broadcast %256 : vector<1x128xi1> to vector<8x128xi1>
    %258 = vector.broadcast %cst_75 : f32 to vector<8x128xf32>
    %259 = arith.select %257, %250, %258 : vector<8x128xi1>, vector<8x128xf32>
    %260 = arith.addf %243, %259 : vector<8x128xf32>
    %c0_76 = arith.constant 0 : index
    %c1920 = arith.constant 1920 : index
    %261 = vector.load %arg2[%c0_76, %c1920] : memref<8x3072xf32, #tpu.memory_space<vmem>>, vector<8x128xf32>
    %c1920_i32 = arith.constant 1920 : i32
    %262 = arith.addi %4, %c1920_i32 : i32
    %263 = tpu.assume_multiple %262, 128 : i32
    %c0_77 = arith.constant 0 : index
    %264 = arith.index_cast %263 : i32 to index
    %265 = vector.load %arg3[%c0_77, %264] : memref<1x3072xf32, #tpu.memory_space<vmem>>, vector<1x128xf32>
    %266 = vector.broadcast %265 : vector<1x128xf32> to vector<8x128xf32>
    %267 = arith.mulf %261, %266 : vector<8x128xf32>
    %c1920_i32_78 = arith.constant 1920 : i32
    %268 = arith.addi %4, %c1920_i32_78 : i32
    %269 = vector.broadcast %268 : i32 to vector<1x128xi32>
    %270 = arith.addi %269, %3 : vector<1x128xi32>
    %c3000_i32_79 = arith.constant 3000 : i32
    %271 = vector.broadcast %c3000_i32_79 : i32 to vector<1x128xi32>
    %272 = arith.cmpi slt, %270, %271 : vector<1x128xi32>
    %cst_80 = arith.constant 0.000000e+00 : f32
    %273 = vector.shape_cast %272 : vector<1x128xi1> to vector<1x128xi1>
    %274 = vector.broadcast %273 : vector<1x128xi1> to vector<8x128xi1>
    %275 = vector.broadcast %cst_80 : f32 to vector<8x128xf32>
    %276 = arith.select %274, %267, %275 : vector<8x128xi1>, vector<8x128xf32>
    %277 = arith.addf %260, %276 : vector<8x128xf32>
    %c0_81 = arith.constant 0 : index
    %c2048 = arith.constant 2048 : index
    %278 = vector.load %arg2[%c0_81, %c2048] : memref<8x3072xf32, #tpu.memory_space<vmem>>, vector<8x128xf32>
    %c2048_i32 = arith.constant 2048 : i32
    %279 = arith.addi %4, %c2048_i32 : i32
    %280 = tpu.assume_multiple %279, 128 : i32
    %c0_82 = arith.constant 0 : index
    %281 = arith.index_cast %280 : i32 to index
    %282 = vector.load %arg3[%c0_82, %281] : memref<1x3072xf32, #tpu.memory_space<vmem>>, vector<1x128xf32>
    %283 = vector.broadcast %282 : vector<1x128xf32> to vector<8x128xf32>
    %284 = arith.mulf %278, %283 : vector<8x128xf32>
    %c2048_i32_83 = arith.constant 2048 : i32
    %285 = arith.addi %4, %c2048_i32_83 : i32
    %286 = vector.broadcast %285 : i32 to vector<1x128xi32>
    %287 = arith.addi %286, %3 : vector<1x128xi32>
    %c3000_i32_84 = arith.constant 3000 : i32
    %288 = vector.broadcast %c3000_i32_84 : i32 to vector<1x128xi32>
    %289 = arith.cmpi slt, %287, %288 : vector<1x128xi32>
    %cst_85 = arith.constant 0.000000e+00 : f32
    %290 = vector.shape_cast %289 : vector<1x128xi1> to vector<1x128xi1>
    %291 = vector.broadcast %290 : vector<1x128xi1> to vector<8x128xi1>
    %292 = vector.broadcast %cst_85 : f32 to vector<8x128xf32>
    %293 = arith.select %291, %284, %292 : vector<8x128xi1>, vector<8x128xf32>
    %294 = arith.addf %277, %293 : vector<8x128xf32>
    %c0_86 = arith.constant 0 : index
    %c2176 = arith.constant 2176 : index
    %295 = vector.load %arg2[%c0_86, %c2176] : memref<8x3072xf32, #tpu.memory_space<vmem>>, vector<8x128xf32>
    %c2176_i32 = arith.constant 2176 : i32
    %296 = arith.addi %4, %c2176_i32 : i32
    %297 = tpu.assume_multiple %296, 128 : i32
    %c0_87 = arith.constant 0 : index
    %298 = arith.index_cast %297 : i32 to index
    %299 = vector.load %arg3[%c0_87, %298] : memref<1x3072xf32, #tpu.memory_space<vmem>>, vector<1x128xf32>
    %300 = vector.broadcast %299 : vector<1x128xf32> to vector<8x128xf32>
    %301 = arith.mulf %295, %300 : vector<8x128xf32>
    %c2176_i32_88 = arith.constant 2176 : i32
    %302 = arith.addi %4, %c2176_i32_88 : i32
    %303 = vector.broadcast %302 : i32 to vector<1x128xi32>
    %304 = arith.addi %303, %3 : vector<1x128xi32>
    %c3000_i32_89 = arith.constant 3000 : i32
    %305 = vector.broadcast %c3000_i32_89 : i32 to vector<1x128xi32>
    %306 = arith.cmpi slt, %304, %305 : vector<1x128xi32>
    %cst_90 = arith.constant 0.000000e+00 : f32
    %307 = vector.shape_cast %306 : vector<1x128xi1> to vector<1x128xi1>
    %308 = vector.broadcast %307 : vector<1x128xi1> to vector<8x128xi1>
    %309 = vector.broadcast %cst_90 : f32 to vector<8x128xf32>
    %310 = arith.select %308, %301, %309 : vector<8x128xi1>, vector<8x128xf32>
    %311 = arith.addf %294, %310 : vector<8x128xf32>
    %c0_91 = arith.constant 0 : index
    %c2304 = arith.constant 2304 : index
    %312 = vector.load %arg2[%c0_91, %c2304] : memref<8x3072xf32, #tpu.memory_space<vmem>>, vector<8x128xf32>
    %c2304_i32 = arith.constant 2304 : i32
    %313 = arith.addi %4, %c2304_i32 : i32
    %314 = tpu.assume_multiple %313, 128 : i32
    %c0_92 = arith.constant 0 : index
    %315 = arith.index_cast %314 : i32 to index
    %316 = vector.load %arg3[%c0_92, %315] : memref<1x3072xf32, #tpu.memory_space<vmem>>, vector<1x128xf32>
    %317 = vector.broadcast %316 : vector<1x128xf32> to vector<8x128xf32>
    %318 = arith.mulf %312, %317 : vector<8x128xf32>
    %c2304_i32_93 = arith.constant 2304 : i32
    %319 = arith.addi %4, %c2304_i32_93 : i32
    %320 = vector.broadcast %319 : i32 to vector<1x128xi32>
    %321 = arith.addi %320, %3 : vector<1x128xi32>
    %c3000_i32_94 = arith.constant 3000 : i32
    %322 = vector.broadcast %c3000_i32_94 : i32 to vector<1x128xi32>
    %323 = arith.cmpi slt, %321, %322 : vector<1x128xi32>
    %cst_95 = arith.constant 0.000000e+00 : f32
    %324 = vector.shape_cast %323 : vector<1x128xi1> to vector<1x128xi1>
    %325 = vector.broadcast %324 : vector<1x128xi1> to vector<8x128xi1>
    %326 = vector.broadcast %cst_95 : f32 to vector<8x128xf32>
    %327 = arith.select %325, %318, %326 : vector<8x128xi1>, vector<8x128xf32>
    %328 = arith.addf %311, %327 : vector<8x128xf32>
    %c0_96 = arith.constant 0 : index
    %c2432 = arith.constant 2432 : index
    %329 = vector.load %arg2[%c0_96, %c2432] : memref<8x3072xf32, #tpu.memory_space<vmem>>, vector<8x128xf32>
    %c2432_i32 = arith.constant 2432 : i32
    %330 = arith.addi %4, %c2432_i32 : i32
    %331 = tpu.assume_multiple %330, 128 : i32
    %c0_97 = arith.constant 0 : index
    %332 = arith.index_cast %331 : i32 to index
    %333 = vector.load %arg3[%c0_97, %332] : memref<1x3072xf32, #tpu.memory_space<vmem>>, vector<1x128xf32>
    %334 = vector.broadcast %333 : vector<1x128xf32> to vector<8x128xf32>
    %335 = arith.mulf %329, %334 : vector<8x128xf32>
    %c2432_i32_98 = arith.constant 2432 : i32
    %336 = arith.addi %4, %c2432_i32_98 : i32
    %337 = vector.broadcast %336 : i32 to vector<1x128xi32>
    %338 = arith.addi %337, %3 : vector<1x128xi32>
    %c3000_i32_99 = arith.constant 3000 : i32
    %339 = vector.broadcast %c3000_i32_99 : i32 to vector<1x128xi32>
    %340 = arith.cmpi slt, %338, %339 : vector<1x128xi32>
    %cst_100 = arith.constant 0.000000e+00 : f32
    %341 = vector.shape_cast %340 : vector<1x128xi1> to vector<1x128xi1>
    %342 = vector.broadcast %341 : vector<1x128xi1> to vector<8x128xi1>
    %343 = vector.broadcast %cst_100 : f32 to vector<8x128xf32>
    %344 = arith.select %342, %335, %343 : vector<8x128xi1>, vector<8x128xf32>
    %345 = arith.addf %328, %344 : vector<8x128xf32>
    %c0_101 = arith.constant 0 : index
    %c2560 = arith.constant 2560 : index
    %346 = vector.load %arg2[%c0_101, %c2560] : memref<8x3072xf32, #tpu.memory_space<vmem>>, vector<8x128xf32>
    %c2560_i32 = arith.constant 2560 : i32
    %347 = arith.addi %4, %c2560_i32 : i32
    %348 = tpu.assume_multiple %347, 128 : i32
    %c0_102 = arith.constant 0 : index
    %349 = arith.index_cast %348 : i32 to index
    %350 = vector.load %arg3[%c0_102, %349] : memref<1x3072xf32, #tpu.memory_space<vmem>>, vector<1x128xf32>
    %351 = vector.broadcast %350 : vector<1x128xf32> to vector<8x128xf32>
    %352 = arith.mulf %346, %351 : vector<8x128xf32>
    %c2560_i32_103 = arith.constant 2560 : i32
    %353 = arith.addi %4, %c2560_i32_103 : i32
    %354 = vector.broadcast %353 : i32 to vector<1x128xi32>
    %355 = arith.addi %354, %3 : vector<1x128xi32>
    %c3000_i32_104 = arith.constant 3000 : i32
    %356 = vector.broadcast %c3000_i32_104 : i32 to vector<1x128xi32>
    %357 = arith.cmpi slt, %355, %356 : vector<1x128xi32>
    %cst_105 = arith.constant 0.000000e+00 : f32
    %358 = vector.shape_cast %357 : vector<1x128xi1> to vector<1x128xi1>
    %359 = vector.broadcast %358 : vector<1x128xi1> to vector<8x128xi1>
    %360 = vector.broadcast %cst_105 : f32 to vector<8x128xf32>
    %361 = arith.select %359, %352, %360 : vector<8x128xi1>, vector<8x128xf32>
    %362 = arith.addf %345, %361 : vector<8x128xf32>
    %c0_106 = arith.constant 0 : index
    %c2688 = arith.constant 2688 : index
    %363 = vector.load %arg2[%c0_106, %c2688] : memref<8x3072xf32, #tpu.memory_space<vmem>>, vector<8x128xf32>
    %c2688_i32 = arith.constant 2688 : i32
    %364 = arith.addi %4, %c2688_i32 : i32
    %365 = tpu.assume_multiple %364, 128 : i32
    %c0_107 = arith.constant 0 : index
    %366 = arith.index_cast %365 : i32 to index
    %367 = vector.load %arg3[%c0_107, %366] : memref<1x3072xf32, #tpu.memory_space<vmem>>, vector<1x128xf32>
    %368 = vector.broadcast %367 : vector<1x128xf32> to vector<8x128xf32>
    %369 = arith.mulf %363, %368 : vector<8x128xf32>
    %c2688_i32_108 = arith.constant 2688 : i32
    %370 = arith.addi %4, %c2688_i32_108 : i32
    %371 = vector.broadcast %370 : i32 to vector<1x128xi32>
    %372 = arith.addi %371, %3 : vector<1x128xi32>
    %c3000_i32_109 = arith.constant 3000 : i32
    %373 = vector.broadcast %c3000_i32_109 : i32 to vector<1x128xi32>
    %374 = arith.cmpi slt, %372, %373 : vector<1x128xi32>
    %cst_110 = arith.constant 0.000000e+00 : f32
    %375 = vector.shape_cast %374 : vector<1x128xi1> to vector<1x128xi1>
    %376 = vector.broadcast %375 : vector<1x128xi1> to vector<8x128xi1>
    %377 = vector.broadcast %cst_110 : f32 to vector<8x128xf32>
    %378 = arith.select %376, %369, %377 : vector<8x128xi1>, vector<8x128xf32>
    %379 = arith.addf %362, %378 : vector<8x128xf32>
    %c0_111 = arith.constant 0 : index
    %c2816 = arith.constant 2816 : index
    %380 = vector.load %arg2[%c0_111, %c2816] : memref<8x3072xf32, #tpu.memory_space<vmem>>, vector<8x128xf32>
    %c2816_i32 = arith.constant 2816 : i32
    %381 = arith.addi %4, %c2816_i32 : i32
    %382 = tpu.assume_multiple %381, 128 : i32
    %c0_112 = arith.constant 0 : index
    %383 = arith.index_cast %382 : i32 to index
    %384 = vector.load %arg3[%c0_112, %383] : memref<1x3072xf32, #tpu.memory_space<vmem>>, vector<1x128xf32>
    %385 = vector.broadcast %384 : vector<1x128xf32> to vector<8x128xf32>
    %386 = arith.mulf %380, %385 : vector<8x128xf32>
    %c2816_i32_113 = arith.constant 2816 : i32
    %387 = arith.addi %4, %c2816_i32_113 : i32
    %388 = vector.broadcast %387 : i32 to vector<1x128xi32>
    %389 = arith.addi %388, %3 : vector<1x128xi32>
    %c3000_i32_114 = arith.constant 3000 : i32
    %390 = vector.broadcast %c3000_i32_114 : i32 to vector<1x128xi32>
    %391 = arith.cmpi slt, %389, %390 : vector<1x128xi32>
    %cst_115 = arith.constant 0.000000e+00 : f32
    %392 = vector.shape_cast %391 : vector<1x128xi1> to vector<1x128xi1>
    %393 = vector.broadcast %392 : vector<1x128xi1> to vector<8x128xi1>
    %394 = vector.broadcast %cst_115 : f32 to vector<8x128xf32>
    %395 = arith.select %393, %386, %394 : vector<8x128xi1>, vector<8x128xf32>
    %396 = arith.addf %379, %395 : vector<8x128xf32>
    %c0_116 = arith.constant 0 : index
    %c2944 = arith.constant 2944 : index
    %397 = vector.load %arg2[%c0_116, %c2944] : memref<8x3072xf32, #tpu.memory_space<vmem>>, vector<8x128xf32>
    %c2944_i32 = arith.constant 2944 : i32
    %398 = arith.addi %4, %c2944_i32 : i32
    %399 = tpu.assume_multiple %398, 128 : i32
    %c0_117 = arith.constant 0 : index
    %400 = arith.index_cast %399 : i32 to index
    %401 = vector.load %arg3[%c0_117, %400] : memref<1x3072xf32, #tpu.memory_space<vmem>>, vector<1x128xf32>
    %402 = vector.broadcast %401 : vector<1x128xf32> to vector<8x128xf32>
    %403 = arith.mulf %397, %402 : vector<8x128xf32>
    %c2944_i32_118 = arith.constant 2944 : i32
    %404 = arith.addi %4, %c2944_i32_118 : i32
    %405 = vector.broadcast %404 : i32 to vector<1x128xi32>
    %406 = arith.addi %405, %3 : vector<1x128xi32>
    %c3000_i32_119 = arith.constant 3000 : i32
    %407 = vector.broadcast %c3000_i32_119 : i32 to vector<1x128xi32>
    %408 = arith.cmpi slt, %406, %407 : vector<1x128xi32>
    %cst_120 = arith.constant 0.000000e+00 : f32
    %409 = vector.shape_cast %408 : vector<1x128xi1> to vector<1x128xi1>
    %410 = vector.broadcast %409 : vector<1x128xi1> to vector<8x128xi1>
    %411 = vector.broadcast %cst_120 : f32 to vector<8x128xf32>
    %412 = arith.select %410, %403, %411 : vector<8x128xi1>, vector<8x128xf32>
    %413 = arith.addf %396, %412 : vector<8x128xf32>
    %c0_121 = arith.constant 0 : index
    %c0_122 = arith.constant 0 : index
    %414 = vector.load %arg5[%c0_121, %c0_122] : memref<8x128xf32, #tpu.memory_space<vmem>>, vector<8x128xf32>
    %415 = arith.addf %414, %413 : vector<8x128xf32>
    %c0_123 = arith.constant 0 : index
    %c0_124 = arith.constant 0 : index
    %416 = vector.load %arg5[%c0_123, %c0_124] : memref<8x128xf32, #tpu.memory_space<vmem>>, vector<8x128xf32>
    tpu.vector_store %arg5[%c0_123, %c0_124], %415 {strides = array<i32>} : memref<8x128xf32, #tpu.memory_space<vmem>>, vector<8x128xf32>,
    %c0_i32_125 = arith.constant 0 : i32
    %417 = arith.cmpi eq, %arg1, %c0_i32_125 : i32
    %418 = arith.extui %417 : i1 to i32
    %c0_i32_126 = arith.constant 0 : i32
    %419 = arith.cmpi ne, %418, %c0_i32_126 : i32
    scf.if %419 {
      %c0_127 = arith.constant 0 : index
      %c0_128 = arith.constant 0 : index
      %420 = vector.load %arg5[%c0_127, %c0_128] : memref<8x128xf32, #tpu.memory_space<vmem>>, vector<8x128xf32>
      %cst_129 = arith.constant dense<0.000000e+00> : vector<8xf32>
      %421 = vector.multi_reduction <add>, %420, %cst_129 [1] : vector<8x128xf32> to vector<8xf32>
      %422 = vector.shape_cast %421 : vector<8xf32> to vector<8x1xf32>
      %c0_130 = arith.constant 0 : index
      %c0_131 = arith.constant 0 : index
      %423 = vector.load %arg4[%c0_130, %c0_131] : memref<8x1xf32, #tpu.memory_space<vmem>>, vector<8x1xf32>
      tpu.vector_store %arg4[%c0_130, %c0_131], %422 {strides = array<i32>} : memref<8x1xf32, #tpu.memory_space<vmem>>, vector<8x1xf32>,
    } else {
    }
    return
  }
  func.func @transform_0(%arg0: i32, %arg1: i32) -> (i32, i32) {
    %c0_i32 = arith.constant 0 : i32
    return %arg0, %arg1 : i32, i32
  }
  func.func @transform_1(%arg0: i32, %arg1: i32) -> (i32, i32) {
    %c0_i32 = arith.constant 0 : i32
    %c0_i32_0 = arith.constant 0 : i32
    %c0_i32_1 = arith.constant 0 : i32
    return %c0_i32, %c0_i32_0 : i32, i32
  }
  func.func @transform_2(%arg0: i32, %arg1: i32) -> (i32, i32) {
    %c0_i32 = arith.constant 0 : i32
    %c0_i32_0 = arith.constant 0 : i32
    return %arg0, %c0_i32 : i32, i32
  }
}

</mosaic_0001>

<llo_original>
// kernel: tpu_custom_call.1
$region0: #{tpu_custom_call.1}
  #allocation0 [shape = 'u32[]', space=smem, size = 0x4, offset = 0x4, fixed_abs, tag = 'smem constant byte address 0x4 - core index']
  #allocation1 [shape = 'u32[144,128]{1,0:T(1,128)}', space=vmem, size = 0x12000, scoped, tag = 'internal scratch']
  #allocation2 [shape = 'f32[8,128]{1,0:T(8,128)}', space=vmem, size = 0x1000, scoped, tag = 'scratch operand']
  %s0 = inlined_call_operand.hbm [shape: f32[4,3000], index: 0, kind: input, shape index: {}]
  %s1 = inlined_call_operand.hbm [shape: f32[1,3072], index: 1, kind: input, shape index: {}]
  %s2 = inlined_call_operand.vmem [shape: f32[4,1], index: 2, kind: output, shape index: {}]
  %s3 = sld [smem:[#allocation0]]
  $region64: #{tpu_custom_call.1} parent=0
    _
  %s5 = ssub.s32 1, %s3
  %s6 = scalar_select 0, %s5, %s3
  $region1: #{tpu_custom_call.1} parent=0
    #allocation3 [shape = 'u8[98304]{0}', space=vmem, size = 0x18000, scoped, tag = 'input window, operand 0, single buffered']
    #allocation4 [shape = 's32[1]{0}', space=sflag, size = 0x4, scoped, tag = 'scoped memory for tpu_custom_call.1']
    #allocation5 [shape = 'u8[12288]{0}', space=vmem, size = 0x3000, scoped, tag = 'input window, operand 1, single buffered']
    #allocation6 [shape = 's32[1]{0}', space=sflag, size = 0x4, scoped, tag = 'scoped memory for tpu_custom_call.1']
    #allocation7 [shape = 'u8[4096]{0}', space=vmem, size = 0x1000, scoped, tag = 'output window, operand 0, single buffered']
    %7 = vsyncpa [#allocation4], 0
    %8 = vsyncpa [#allocation6], 0
    // Predicated region
    $region2: #{tpu_custom_call.1} parent=1 // pred_check
      _
    $region3: #{tpu_custom_call.1} parent=1 // pred_check_branch
      %10 = sbr.rel (0) target = $region5
    $region4: #{tpu_custom_call.1} parent=1 // pred_region
      %s12 = ssub.s32 3072, 1536
      %13 = vsyncadd [#allocation4], %s12
      %s14 = sshll.u32 [#allocation3], 4
      %s15 = int_to_ptr.vmem [resolvable:$true] %s14
      %20 = dma.hbm_to_vmem [thread:$0]  %s0, 1536, %s15, [#allocation4], 1536, 1536, 96
    $region5: #{tpu_custom_call.1} parent=1 // pred_fallthru
      _
    // Predicated region
    $region6: #{tpu_custom_call.1} parent=1 // pred_check
      _
    $region7: #{tpu_custom_call.1} parent=1 // pred_check_branch
      %22 = sbr.rel (0) target = $region9
    $region8: #{tpu_custom_call.1} parent=1 // pred_region
      %s24 = ssub.s32 384, 384
      %25 = vsyncadd [#allocation6], %s24
      %s27 = sshll.u32 [#allocation5], 4
      %s28 = int_to_ptr.vmem [resolvable:$true] %s27
      %30 = dma.hbm_to_vmem [thread:$0]  %s1, 384, %s28, [#allocation6]
    $region9: #{tpu_custom_call.1} parent=1 // pred_fallthru
      _
    // Predicated region
    $region10: #{tpu_custom_call.1} parent=1 // pred_check
      _
    $region11: #{tpu_custom_call.1} parent=1 // pred_check_branch
      %32 = sbr.rel (0) target = $region13
    $region12: #{tpu_custom_call.1} parent=1 // pred_region
      %33 = dma.done [#allocation4], 3072
    $region13: #{tpu_custom_call.1} parent=1 // pred_fallthru
      _
    // Predicated region
    $region14: #{tpu_custom_call.1} parent=1 // pred_check
      _
    $region15: #{tpu_custom_call.1} parent=1 // pred_check_branch
      %35 = sbr.rel (0) target = $region17
    $region16: #{tpu_custom_call.1} parent=1 // pred_region
      %36 = dma.done [#allocation6], 384
    $region17: #{tpu_custom_call.1} parent=1 // pred_fallthru
      _
    %p37 = scmp.eq.s32.totalorder 0, 0
    // Predicated region
    $region18: #{tpu_custom_call.1} parent=1 // pred_check
      %p38 = pneg %p37
    $region19: #{tpu_custom_call.1} parent=1 // pred_check_branch
      %40 = sbr.rel (%p38) target = $region21
    $region20: #{tpu_custom_call.1} parent=1 // pred_region
      %41 = vst [vmem:[#allocation2] sm:$0xff] 0.0
    $region21: #{tpu_custom_call.1} parent=1 // pred_fallthru
      _
    %v42 = vlaneseq
    %v43 = vand.u32 %v42, 127
    %s44 = smul.u32 0, 3072
    %v45 = vld [vmem:[#allocation3] sm:$0xf]
    %v46 = vld [vmem:[#allocation3 + $0x60] sm:$0xf]
    %s47 = sshra.s32 %s44, 7
    %s48 = sand.u32 %s44, 127
    %s49 = scalar_lea.vmem [#allocation5], %s47
    %v50 = vld [vmem:[%s49] sm:$0x1]
    %v52 = vlaneseq
    %v53 = vshrl.u32 %v52, 7
    %v54 = vsub.s32 0, %v53
    %v55 = vrot.slane %v50, %v54
    %v57 = vcombine.high %v55, %v55
    %v59 = vmul.f32 %v45, %v55
    %v60 = vmul.f32 %v46, %v57
    %v61 = vstv %s44
    %v62 = vadd.s32 %v61, %v43
    %vm63 = vcmp.lt.s32.totalorder %v62, 3000
    %v64 = vsel %vm63, 1, 0
    %vm65 = vcmp.eq.s32.totalorder %v64, 1
    %v68 = vcombine.low %v59, %v60
    %v70 = vsel %vm65, %v68, 0.0
    %v71 = vadd.f32 %v70, 0.0
    %v72 = vld [vmem:[#allocation3 + $0x4] sm:$0xf]
    %v73 = vld [vmem:[#allocation3 + $0x64] sm:$0xf]
    %s74 = sadd.s32 %s44, 128
    %s75 = sshra.s32 %s74, 7
    %s76 = sand.u32 %s74, 127
    %s77 = scalar_lea.vmem [#allocation5], %s75
    %v78 = vld [vmem:[%s77] sm:$0x1]
    %v80 = vlaneseq
    %v81 = vshrl.u32 %v80, 7
    %v82 = vsub.s32 0, %v81
    %v83 = vrot.slane %v78, %v82
    %v85 = vcombine.high %v83, %v83
    %v87 = vmul.f32 %v72, %v83
    %v88 = vmul.f32 %v73, %v85
    %v89 = vstv %s74
    %v90 = vadd.s32 %v89, %v43
    %vm91 = vcmp.lt.s32.totalorder %v90, 3000
    %v92 = vsel %vm91, 1, 0
    %vm93 = vcmp.eq.s32.totalorder %v92, 1
    %v96 = vcombine.low %v87, %v88
    %v98 = vsel %vm93, %v96, 0.0
    %v99 = vadd.f32 %v71, %v98
    %v100 = vld [vmem:[#allocation3 + $0x8] sm:$0xf]
    %v101 = vld [vmem:[#allocation3 + $0x68] sm:$0xf]
    %s102 = sadd.s32 %s44, 256
    %s103 = sshra.s32 %s102, 7
    %s104 = sand.u32 %s102, 127
    %s105 = scalar_lea.vmem [#allocation5], %s103
    %v106 = vld [vmem:[%s105] sm:$0x1]
    %v108 = vlaneseq
    %v109 = vshrl.u32 %v108, 7
    %v110 = vsub.s32 0, %v109
    %v111 = vrot.slane %v106, %v110
    %v113 = vcombine.high %v111, %v111
    %v115 = vmul.f32 %v100, %v111
    %v116 = vmul.f32 %v101, %v113
    %v117 = vstv %s102
    %v118 = vadd.s32 %v117, %v43
    %vm119 = vcmp.lt.s32.totalorder %v118, 3000
    %v120 = vsel %vm119, 1, 0
    %vm121 = vcmp.eq.s32.totalorder %v120, 1
    %v124 = vcombine.low %v115, %v116
    %v126 = vsel %vm121, %v124, 0.0
    %v127 = vadd.f32 %v99, %v126
    %v128 = vld [vmem:[#allocation3 + $0xc] sm:$0xf]
    %v129 = vld [vmem:[#allocation3 + $0x6c] sm:$0xf]
    %s130 = sadd.s32 %s44, 384
    %s131 = sshra.s32 %s130, 7
    %s132 = sand.u32 %s130, 127
    %s133 = scalar_lea.vmem [#allocation5], %s131
    %v134 = vld [vmem:[%s133] sm:$0x1]
    %v136 = vlaneseq
    %v137 = vshrl.u32 %v136, 7
    %v138 = vsub.s32 0, %v137
    %v139 = vrot.slane %v134, %v138
    %v141 = vcombine.high %v139, %v139
    %v143 = vmul.f32 %v128, %v139
    %v144 = vmul.f32 %v129, %v141
    %v145 = vstv %s130
    %v146 = vadd.s32 %v145, %v43
    %vm147 = vcmp.lt.s32.totalorder %v146, 3000
    %v148 = vsel %vm147, 1, 0
    %vm149 = vcmp.eq.s32.totalorder %v148, 1
    %v152 = vcombine.low %v143, %v144
    %v154 = vsel %vm149, %v152, 0.0
    %v155 = vadd.f32 %v127, %v154
    %v156 = vld [vmem:[#allocation3 + $0x10] sm:$0xf]
    %v157 = vld [vmem:[#allocation3 + $0x70] sm:$0xf]
    %s158 = sadd.s32 %s44, 512
    %s159 = sshra.s32 %s158, 7
    %s160 = sand.u32 %s158, 127
    %s161 = scalar_lea.vmem [#allocation5], %s159
    %v162 = vld [vmem:[%s161] sm:$0x1]
    %v164 = vlaneseq
    %v165 = vshrl.u32 %v164, 7
    %v166 = vsub.s32 0, %v165
    %v167 = vrot.slane %v162, %v166
    %v169 = vcombine.high %v167, %v167
    %v171 = vmul.f32 %v156, %v167
    %v172 = vmul.f32 %v157, %v169
    %v173 = vstv %s158
    %v174 = vadd.s32 %v173, %v43
    %vm175 = vcmp.lt.s32.totalorder %v174, 3000
    %v176 = vsel %vm175, 1, 0
    %vm177 = vcmp.eq.s32.totalorder %v176, 1
    %v180 = vcombine.low %v171, %v172
    %v182 = vsel %vm177, %v180, 0.0
    %v183 = vadd.f32 %v155, %v182
    %v184 = vld [vmem:[#allocation3 + $0x14] sm:$0xf]
    %v185 = vld [vmem:[#allocation3 + $0x74] sm:$0xf]
    %s186 = sadd.s32 %s44, 640
    %s187 = sshra.s32 %s186, 7
    %s188 = sand.u32 %s186, 127
    %s189 = scalar_lea.vmem [#allocation5], %s187
    %v190 = vld [vmem:[%s189] sm:$0x1]
    %v192 = vlaneseq
    %v193 = vshrl.u32 %v192, 7
    %v194 = vsub.s32 0, %v193
    %v195 = vrot.slane %v190, %v194
    %v197 = vcombine.high %v195, %v195
    %v199 = vmul.f32 %v184, %v195
    %v200 = vmul.f32 %v185, %v197
    %v201 = vstv %s186
    %v202 = vadd.s32 %v201, %v43
    %vm203 = vcmp.lt.s32.totalorder %v202, 3000
    %v204 = vsel %vm203, 1, 0
    %vm205 = vcmp.eq.s32.totalorder %v204, 1
    %v208 = vcombine.low %v199, %v200
    %v210 = vsel %vm205, %v208, 0.0
    %v211 = vadd.f32 %v183, %v210
    %v212 = vld [vmem:[#allocation3 + $0x18] sm:$0xf]
    %v213 = vld [vmem:[#allocation3 + $0x78] sm:$0xf]
    %s214 = sadd.s32 %s44, 768
    %s215 = sshra.s32 %s214, 7
    %s216 = sand.u32 %s214, 127
    %s217 = scalar_lea.vmem [#allocation5], %s215
    %v218 = vld [vmem:[%s217] sm:$0x1]
    %v220 = vlaneseq
    %v221 = vshrl.u32 %v220, 7
    %v222 = vsub.s32 0, %v221
    %v223 = vrot.slane %v218, %v222
    %v225 = vcombine.high %v223, %v223
    %v227 = vmul.f32 %v212, %v223
    %v228 = vmul.f32 %v213, %v225
    %v229 = vstv %s214
    %v230 = vadd.s32 %v229, %v43
    %vm231 = vcmp.lt.s32.totalorder %v230, 3000
    %v232 = vsel %vm231, 1, 0
    %vm233 = vcmp.eq.s32.totalorder %v232, 1
    %v236 = vcombine.low %v227, %v228
    %v238 = vsel %vm233, %v236, 0.0
    %v239 = vadd.f32 %v211, %v238
    %v240 = vld [vmem:[#allocation3 + $0x1c] sm:$0xf]
    %v241 = vld [vmem:[#allocation3 + $0x7c] sm:$0xf]
    %s242 = sadd.s32 %s44, 896
    %s243 = sshra.s32 %s242, 7
    %s244 = sand.u32 %s242, 127
    %s245 = scalar_lea.vmem [#allocation5], %s243
    %v246 = vld [vmem:[%s245] sm:$0x1]
    %v248 = vlaneseq
    %v249 = vshrl.u32 %v248, 7
    %v250 = vsub.s32 0, %v249
    %v251 = vrot.slane %v246, %v250
    %v253 = vcombine.high %v251, %v251
    %v255 = vmul.f32 %v240, %v251
    %v256 = vmul.f32 %v241, %v253
    %v257 = vstv %s242
    %v258 = vadd.s32 %v257, %v43
    %vm259 = vcmp.lt.s32.totalorder %v258, 3000
    %v260 = vsel %vm259, 1, 0
    %vm261 = vcmp.eq.s32.totalorder %v260, 1
    %v264 = vcombine.low %v255, %v256
    %v266 = vsel %vm261, %v264, 0.0
    %v267 = vadd.f32 %v239, %v266
    %v268 = vld [vmem:[#allocation3 + $0x20] sm:$0xf]
    %v269 = vld [vmem:[#allocation3 + $0x80] sm:$0xf]
    %s270 = sadd.s32 %s44, 1024
    %s271 = sshra.s32 %s270, 7
    %s272 = sand.u32 %s270, 127
    %s273 = scalar_lea.vmem [#allocation5], %s271
    %v274 = vld [vmem:[%s273] sm:$0x1]
    %v276 = vlaneseq
    %v277 = vshrl.u32 %v276, 7
    %v278 = vsub.s32 0, %v277
    %v279 = vrot.slane %v274, %v278
    %v281 = vcombine.high %v279, %v279
    %v283 = vmul.f32 %v268, %v279
    %v284 = vmul.f32 %v269, %v281
    %v285 = vstv %s270
    %v286 = vadd.s32 %v285, %v43
    %vm287 = vcmp.lt.s32.totalorder %v286, 3000
    %v288 = vsel %vm287, 1, 0
    %vm289 = vcmp.eq.s32.totalorder %v288, 1
    %v292 = vcombine.low %v283, %v284
    %v294 = vsel %vm289, %v292, 0.0
    %v295 = vadd.f32 %v267, %v294
    %v296 = vld [vmem:[#allocation3 + $0x24] sm:$0xf]
    %v297 = vld [vmem:[#allocation3 + $0x84] sm:$0xf]
    %s298 = sadd.s32 %s44, 1152
    %s299 = sshra.s32 %s298, 7
    %s300 = sand.u32 %s298, 127
    %s301 = scalar_lea.vmem [#allocation5], %s299
    %v302 = vld [vmem:[%s301] sm:$0x1]
    %v304 = vlaneseq
    %v305 = vshrl.u32 %v304, 7
    %v306 = vsub.s32 0, %v305
    %v307 = vrot.slane %v302, %v306
    %v309 = vcombine.high %v307, %v307
    %v311 = vmul.f32 %v296, %v307
    %v312 = vmul.f32 %v297, %v309
    %v313 = vstv %s298
    %v314 = vadd.s32 %v313, %v43
    %vm315 = vcmp.lt.s32.totalorder %v314, 3000
    %v316 = vsel %vm315, 1, 0
    %vm317 = vcmp.eq.s32.totalorder %v316, 1
    %v320 = vcombine.low %v311, %v312
    %v322 = vsel %vm317, %v320, 0.0
    %v323 = vadd.f32 %v295, %v322
    %v324 = vld [vmem:[#allocation3 + $0x28] sm:$0xf]
    %v325 = vld [vmem:[#allocation3 + $0x88] sm:$0xf]
    %s326 = sadd.s32 %s44, 1280
    %s327 = sshra.s32 %s326, 7
    %s328 = sand.u32 %s326, 127
    %s329 = scalar_lea.vmem [#allocation5], %s327
    %v330 = vld [vmem:[%s329] sm:$0x1]
    %v332 = vlaneseq
    %v333 = vshrl.u32 %v332, 7
    %v334 = vsub.s32 0, %v333
    %v335 = vrot.slane %v330, %v334
    %v337 = vcombine.high %v335, %v335
    %v339 = vmul.f32 %v324, %v335
    %v340 = vmul.f32 %v325, %v337
    %v341 = vstv %s326
    %v342 = vadd.s32 %v341, %v43
    %vm343 = vcmp.lt.s32.totalorder %v342, 3000
    %v344 = vsel %vm343, 1, 0
    %vm345 = vcmp.eq.s32.totalorder %v344, 1
    %v348 = vcombine.low %v339, %v340
    %v350 = vsel %vm345, %v348, 0.0
    %v351 = vadd.f32 %v323, %v350
    %v352 = vld [vmem:[#allocation3 + $0x2c] sm:$0xf]
    %v353 = vld [vmem:[#allocation3 + $0x8c] sm:$0xf]
    %s354 = sadd.s32 %s44, 1408
    %s355 = sshra.s32 %s354, 7
    %s356 = sand.u32 %s354, 127
    %s357 = scalar_lea.vmem [#allocation5], %s355
    %v358 = vld [vmem:[%s357] sm:$0x1]
    %v360 = vlaneseq
    %v361 = vshrl.u32 %v360, 7
    %v362 = vsub.s32 0, %v361
    %v363 = vrot.slane %v358, %v362
    %v365 = vcombine.high %v363, %v363
    %v367 = vmul.f32 %v352, %v363
    %v368 = vmul.f32 %v353, %v365
    %v369 = vstv %s354
    %v370 = vadd.s32 %v369, %v43
    %vm371 = vcmp.lt.s32.totalorder %v370, 3000
    %v372 = vsel %vm371, 1, 0
    %vm373 = vcmp.eq.s32.totalorder %v372, 1
    %v376 = vcombine.low %v367, %v368
    %v378 = vsel %vm373, %v376, 0.0
    %v379 = vadd.f32 %v351, %v378
    %v380 = vld [vmem:[#allocation3 + $0x30] sm:$0xf]
    %v381 = vld [vmem:[#allocation3 + $0x90] sm:$0xf]
    %s382 = sadd.s32 %s44, 1536
    %s383 = sshra.s32 %s382, 7
    %s384 = sand.u32 %s382, 127
    %s385 = scalar_lea.vmem [#allocation5], %s383
    %v386 = vld [vmem:[%s385] sm:$0x1]
    %v388 = vlaneseq
    %v389 = vshrl.u32 %v388, 7
    %v390 = vsub.s32 0, %v389
    %v391 = vrot.slane %v386, %v390
    %v393 = vcombine.high %v391, %v391
    %v395 = vmul.f32 %v380, %v391
    %v396 = vmul.f32 %v381, %v393
    %v397 = vstv %s382
    %v398 = vadd.s32 %v397, %v43
    %vm399 = vcmp.lt.s32.totalorder %v398, 3000
    %v400 = vsel %vm399, 1, 0
    %vm401 = vcmp.eq.s32.totalorder %v400, 1
    %v404 = vcombine.low %v395, %v396
    %v406 = vsel %vm401, %v404, 0.0
    %v407 = vadd.f32 %v379, %v406
    %v408 = vld [vmem:[#allocation3 + $0x34] sm:$0xf]
    %v409 = vld [vmem:[#allocation3 + $0x94] sm:$0xf]
    %s410 = sadd.s32 %s44, 1664
    %s411 = sshra.s32 %s410, 7
    %s412 = sand.u32 %s410, 127
    %s413 = scalar_lea.vmem [#allocation5], %s411
    %v414 = vld [vmem:[%s413] sm:$0x1]
    %v416 = vlaneseq
    %v417 = vshrl.u32 %v416, 7
    %v418 = vsub.s32 0, %v417
    %v419 = vrot.slane %v414, %v418
    %v421 = vcombine.high %v419, %v419
    %v423 = vmul.f32 %v408, %v419
    %v424 = vmul.f32 %v409, %v421
    %v425 = vstv %s410
    %v426 = vadd.s32 %v425, %v43
    %vm427 = vcmp.lt.s32.totalorder %v426, 3000
    %v428 = vsel %vm427, 1, 0
    %vm429 = vcmp.eq.s32.totalorder %v428, 1
    %v432 = vcombine.low %v423, %v424
    %v434 = vsel %vm429, %v432, 0.0
    %v435 = vadd.f32 %v407, %v434
    %v436 = vld [vmem:[#allocation3 + $0x38] sm:$0xf]
    %v437 = vld [vmem:[#allocation3 + $0x98] sm:$0xf]
    %s438 = sadd.s32 %s44, 1792
    %s439 = sshra.s32 %s438, 7
    %s440 = sand.u32 %s438, 127
    %s441 = scalar_lea.vmem [#allocation5], %s439
    %v442 = vld [vmem:[%s441] sm:$0x1]
    %v444 = vlaneseq
    %v445 = vshrl.u32 %v444, 7
    %v446 = vsub.s32 0, %v445
    %v447 = vrot.slane %v442, %v446
    %v449 = vcombine.high %v447, %v447
    %v451 = vmul.f32 %v436, %v447
    %v452 = vmul.f32 %v437, %v449
    %v453 = vstv %s438
    %v454 = vadd.s32 %v453, %v43
    %vm455 = vcmp.lt.s32.totalorder %v454, 3000
    %v456 = vsel %vm455, 1, 0
    %vm457 = vcmp.eq.s32.totalorder %v456, 1
    %v460 = vcombine.low %v451, %v452
    %v462 = vsel %vm457, %v460, 0.0
    %v463 = vadd.f32 %v435, %v462
    %v464 = vld [vmem:[#allocation3 + $0x3c] sm:$0xf]
    %v465 = vld [vmem:[#allocation3 + $0x9c] sm:$0xf]
    %s466 = sadd.s32 %s44, 1920
    %s467 = sshra.s32 %s466, 7
    %s468 = sand.u32 %s466, 127
    %s469 = scalar_lea.vmem [#allocation5], %s467
    %v470 = vld [vmem:[%s469] sm:$0x1]
    %v472 = vlaneseq
    %v473 = vshrl.u32 %v472, 7
    %v474 = vsub.s32 0, %v473
    %v475 = vrot.slane %v470, %v474
    %v477 = vcombine.high %v475, %v475
    %v479 = vmul.f32 %v464, %v475
    %v480 = vmul.f32 %v465, %v477
    %v481 = vstv %s466
    %v482 = vadd.s32 %v481, %v43
    %vm483 = vcmp.lt.s32.totalorder %v482, 3000
    %v484 = vsel %vm483, 1, 0
    %vm485 = vcmp.eq.s32.totalorder %v484, 1
    %v488 = vcombine.low %v479, %v480
    %v490 = vsel %vm485, %v488, 0.0
    %v491 = vadd.f32 %v463, %v490
    %v492 = vld [vmem:[#allocation3 + $0x40] sm:$0xf]
    %v493 = vld [vmem:[#allocation3 + $0xa0] sm:$0xf]
    %s494 = sadd.s32 %s44, 2048
    %s495 = sshra.s32 %s494, 7
    %s496 = sand.u32 %s494, 127
    %s497 = scalar_lea.vmem [#allocation5], %s495
    %v498 = vld [vmem:[%s497] sm:$0x1]
    %v500 = vlaneseq
    %v501 = vshrl.u32 %v500, 7
    %v502 = vsub.s32 0, %v501
    %v503 = vrot.slane %v498, %v502
    %v505 = vcombine.high %v503, %v503
    %v507 = vmul.f32 %v492, %v503
    %v508 = vmul.f32 %v493, %v505
    %v509 = vstv %s494
    %v510 = vadd.s32 %v509, %v43
    %vm511 = vcmp.lt.s32.totalorder %v510, 3000
    %v512 = vsel %vm511, 1, 0
    %vm513 = vcmp.eq.s32.totalorder %v512, 1
    %v516 = vcombine.low %v507, %v508
    %v518 = vsel %vm513, %v516, 0.0
    %v519 = vadd.f32 %v491, %v518
    %v520 = vld [vmem:[#allocation3 + $0x44] sm:$0xf]
    %v521 = vld [vmem:[#allocation3 + $0xa4] sm:$0xf]
    %s522 = sadd.s32 %s44, 2176
    %s523 = sshra.s32 %s522, 7
    %s524 = sand.u32 %s522, 127
    %s525 = scalar_lea.vmem [#allocation5], %s523
    %v526 = vld [vmem:[%s525] sm:$0x1]
    %v528 = vlaneseq
    %v529 = vshrl.u32 %v528, 7
    %v530 = vsub.s32 0, %v529
    %v531 = vrot.slane %v526, %v530
    %v533 = vcombine.high %v531, %v531
    %v535 = vmul.f32 %v520, %v531
    %v536 = vmul.f32 %v521, %v533
    %v537 = vstv %s522
    %v538 = vadd.s32 %v537, %v43
    %vm539 = vcmp.lt.s32.totalorder %v538, 3000
    %v540 = vsel %vm539, 1, 0
    %vm541 = vcmp.eq.s32.totalorder %v540, 1
    %v544 = vcombine.low %v535, %v536
    %v546 = vsel %vm541, %v544, 0.0
    %v547 = vadd.f32 %v519, %v546
    %v548 = vld [vmem:[#allocation3 + $0x48] sm:$0xf]
    %v549 = vld [vmem:[#allocation3 + $0xa8] sm:$0xf]
    %s550 = sadd.s32 %s44, 2304
    %s551 = sshra.s32 %s550, 7
    %s552 = sand.u32 %s550, 127
    %s553 = scalar_lea.vmem [#allocation5], %s551
    %v554 = vld [vmem:[%s553] sm:$0x1]
    %v556 = vlaneseq
    %v557 = vshrl.u32 %v556, 7
    %v558 = vsub.s32 0, %v557
    %v559 = vrot.slane %v554, %v558
    %v561 = vcombine.high %v559, %v559
    %v563 = vmul.f32 %v548, %v559
    %v564 = vmul.f32 %v549, %v561
    %v565 = vstv %s550
    %v566 = vadd.s32 %v565, %v43
    %vm567 = vcmp.lt.s32.totalorder %v566, 3000
    %v568 = vsel %vm567, 1, 0
    %vm569 = vcmp.eq.s32.totalorder %v568, 1
    %v572 = vcombine.low %v563, %v564
    %v574 = vsel %vm569, %v572, 0.0
    %v575 = vadd.f32 %v547, %v574
    %v576 = vld [vmem:[#allocation3 + $0x4c] sm:$0xf]
    %v577 = vld [vmem:[#allocation3 + $0xac] sm:$0xf]
    %s578 = sadd.s32 %s44, 2432
    %s579 = sshra.s32 %s578, 7
    %s580 = sand.u32 %s578, 127
    %s581 = scalar_lea.vmem [#allocation5], %s579
    %v582 = vld [vmem:[%s581] sm:$0x1]
    %v584 = vlaneseq
    %v585 = vshrl.u32 %v584, 7
    %v586 = vsub.s32 0, %v585
    %v587 = vrot.slane %v582, %v586
    %v589 = vcombine.high %v587, %v587
    %v591 = vmul.f32 %v576, %v587
    %v592 = vmul.f32 %v577, %v589
    %v593 = vstv %s578
    %v594 = vadd.s32 %v593, %v43
    %vm595 = vcmp.lt.s32.totalorder %v594, 3000
    %v596 = vsel %vm595, 1, 0
    %vm597 = vcmp.eq.s32.totalorder %v596, 1
    %v600 = vcombine.low %v591, %v592
    %v602 = vsel %vm597, %v600, 0.0
    %v603 = vadd.f32 %v575, %v602
    %v604 = vld [vmem:[#allocation3 + $0x50] sm:$0xf]
    %v605 = vld [vmem:[#allocation3 + $0xb0] sm:$0xf]
    %s606 = sadd.s32 %s44, 2560
    %s607 = sshra.s32 %s606, 7
    %s608 = sand.u32 %s606, 127
    %s609 = scalar_lea.vmem [#allocation5], %s607
    %v610 = vld [vmem:[%s609] sm:$0x1]
    %v612 = vlaneseq
    %v613 = vshrl.u32 %v612, 7
    %v614 = vsub.s32 0, %v613
    %v615 = vrot.slane %v610, %v614
    %v617 = vcombine.high %v615, %v615
    %v619 = vmul.f32 %v604, %v615
    %v620 = vmul.f32 %v605, %v617
    %v621 = vstv %s606
    %v622 = vadd.s32 %v621, %v43
    %vm623 = vcmp.lt.s32.totalorder %v622, 3000
    %v624 = vsel %vm623, 1, 0
    %vm625 = vcmp.eq.s32.totalorder %v624, 1
    %v628 = vcombine.low %v619, %v620
    %v630 = vsel %vm625, %v628, 0.0
    %v631 = vadd.f32 %v603, %v630
    %v632 = vld [vmem:[#allocation3 + $0x54] sm:$0xf]
    %v633 = vld [vmem:[#allocation3 + $0xb4] sm:$0xf]
    %s634 = sadd.s32 %s44, 2688
    %s635 = sshra.s32 %s634, 7
    %s636 = sand.u32 %s634, 127
    %s637 = scalar_lea.vmem [#allocation5], %s635
    %v638 = vld [vmem:[%s637] sm:$0x1]
    %v640 = vlaneseq
    %v641 = vshrl.u32 %v640, 7
    %v642 = vsub.s32 0, %v641
    %v643 = vrot.slane %v638, %v642
    %v645 = vcombine.high %v643, %v643
    %v647 = vmul.f32 %v632, %v643
    %v648 = vmul.f32 %v633, %v645
    %v649 = vstv %s634
    %v650 = vadd.s32 %v649, %v43
    %vm651 = vcmp.lt.s32.totalorder %v650, 3000
    %v652 = vsel %vm651, 1, 0
    %vm653 = vcmp.eq.s32.totalorder %v652, 1
    %v656 = vcombine.low %v647, %v648
    %v658 = vsel %vm653, %v656, 0.0
    %v659 = vadd.f32 %v631, %v658
    %v660 = vld [vmem:[#allocation3 + $0x58] sm:$0xf]
    %v661 = vld [vmem:[#allocation3 + $0xb8] sm:$0xf]
    %s662 = sadd.s32 %s44, 2816
    %s663 = sshra.s32 %s662, 7
    %s664 = sand.u32 %s662, 127
    %s665 = scalar_lea.vmem [#allocation5], %s663
    %v666 = vld [vmem:[%s665] sm:$0x1]
    %v668 = vlaneseq
    %v669 = vshrl.u32 %v668, 7
    %v670 = vsub.s32 0, %v669
    %v671 = vrot.slane %v666, %v670
    %v673 = vcombine.high %v671, %v671
    %v675 = vmul.f32 %v660, %v671
    %v676 = vmul.f32 %v661, %v673
    %v677 = vstv %s662
    %v678 = vadd.s32 %v677, %v43
    %vm679 = vcmp.lt.s32.totalorder %v678, 3000
    %v680 = vsel %vm679, 1, 0
    %vm681 = vcmp.eq.s32.totalorder %v680, 1
    %v684 = vcombine.low %v675, %v676
    %v686 = vsel %vm681, %v684, 0.0
    %v687 = vadd.f32 %v659, %v686
    %v688 = vld [vmem:[#allocation3 + $0x5c] sm:$0xf]
    %v689 = vld [vmem:[#allocation3 + $0xbc] sm:$0xf]
    %s690 = sadd.s32 %s44, 2944
    %s691 = sshra.s32 %s690, 7
    %s692 = sand.u32 %s690, 127
    %s693 = scalar_lea.vmem [#allocation5], %s691
    %v694 = vld [vmem:[%s693] sm:$0x1]
    %v696 = vlaneseq
    %v697 = vshrl.u32 %v696, 7
    %v698 = vsub.s32 0, %v697
    %v699 = vrot.slane %v694, %v698
    %v701 = vcombine.high %v699, %v699
    %v703 = vmul.f32 %v688, %v699
    %v704 = vmul.f32 %v689, %v701
    %v705 = vstv %s690
    %v706 = vadd.s32 %v705, %v43
    %vm707 = vcmp.lt.s32.totalorder %v706, 3000
    %v708 = vsel %vm707, 1, 0
    %vm709 = vcmp.eq.s32.totalorder %v708, 1
    %v712 = vcombine.low %v703, %v704
    %v714 = vsel %vm709, %v712, 0.0
    %v715 = vadd.f32 %v687, %v714
    %v716 = vld [vmem:[#allocation2] sm:$0xff]
    %v717 = vadd.f32 %v716, %v715
    %718 = vst [vmem:[#allocation2] sm:$0xff] %v717
    // Predicated region
    $region22: #{tpu_custom_call.1} parent=1 // pred_check
      %p719 = pneg %p37
    $region23: #{tpu_custom_call.1} parent=1 // pred_check_branch
      %721 = sbr.rel (%p719) target = $region25
    $region24: #{tpu_custom_call.1} parent=1 // pred_region
      %v722 = vld [vmem:[#allocation2] sm:$0xff]
      %723 = vadd.xlane.f32.xlu0 %v722
      %v724 = vpop.xlane.xlu0 %723
      %vm725 = vcmask 7168
      %726 = vst.msk [vmem:[#allocation7] sm:$0xff] %vm725, %v724
    $region25: #{tpu_custom_call.1} parent=1 // pred_fallthru
      _
    // Predicated region
    $region26: #{tpu_custom_call.1} parent=1 // pred_check
      _
    $region27: #{tpu_custom_call.1} parent=1 // pred_check_branch
      %728 = sbr.rel (0) target = $region29
    $region28: #{tpu_custom_call.1} parent=1 // pred_region
      // Predicated region
      $region30: #{tpu_custom_call.1} parent=28 // pred_check
        _
      $region31: #{tpu_custom_call.1} parent=28 // pred_check_branch
        %730 = sbr.rel (0) target = $region33
      $region32: #{tpu_custom_call.1} parent=28 // pred_region
        // Predicated region
        $region34: #{tpu_custom_call.1} parent=32 // pred_check
          _
        $region35: #{tpu_custom_call.1} parent=32 // pred_check_branch
          %732 = sbr.rel target = $region37
        $region36: #{tpu_custom_call.1} parent=32 // pred_region
          // Predicated region
          $region49: #{tpu_custom_call.1} parent=36 // pred_check
            _
          $region50: #{tpu_custom_call.1} parent=36 // pred_check_branch
            %748 = sbr.rel (0) target = $region52
          $region51: #{tpu_custom_call.1} parent=36 // pred_region
            %s750 = ssub.s32 16, 1
            loop: start=0, step=1, limit=1
            $region53: #{tpu_custom_call.1} parent=51 // loop_pre_header
              _
            $region54: #{tpu_custom_call.1} parent=51 // loop_header
              %s752 = sphi 0, %s756
              %p753 = scmp.ge.s32.totalorder %s752, 1
              %s757 = sphi [#allocation7], [#allocation7]
              %s758 = sphi %s2, %s2
            $region55: #{tpu_custom_call.1} parent=51 // loop_header_branch
              %755 = sbr.rel (%p753) target = $region59
            $region56: #{tpu_custom_call.1} parent=51 // loop_body
              %v759 = vld [vmem:[%s757] sm:%s750]
              %760 = vst [vmem:[%s758] sm:%s750] %v759
            $region57: #{tpu_custom_call.1} parent=51 // loop_footer
              %s756 = sadd.s32 1, %s752
            $region58: #{tpu_custom_call.1} parent=51 // loop_footer_branch
              %751 = sbr.rel target = $region54
            $region59: #{tpu_custom_call.1} parent=51 // loop_exit
              _
          $region52: #{tpu_custom_call.1} parent=36 // pred_fallthru
            _
        $region37: #{tpu_custom_call.1} parent=32 // pred_fallthru
          _
        // Predicated region
        $region38: #{tpu_custom_call.1} parent=32 // pred_check
          _
        $region39: #{tpu_custom_call.1} parent=32 // pred_check_branch
          %734 = sbr.rel (0) target = $region41
        $region40: #{tpu_custom_call.1} parent=32 // pred_region
          %s736 = ssub.s32 16, 1
          loop: start=0, step=1, limit=1
          $region42: #{tpu_custom_call.1} parent=40 // loop_pre_header
            _
          $region43: #{tpu_custom_call.1} parent=40 // loop_header
            %s738 = sphi 0, %s742
            %p739 = scmp.ge.s32.totalorder %s738, 1
            %s743 = sphi [#allocation7], [#allocation7]
            %s744 = sphi %s2, %s2
          $region44: #{tpu_custom_call.1} parent=40 // loop_header_branch
            %741 = sbr.rel (%p739) target = $region48
          $region45: #{tpu_custom_call.1} parent=40 // loop_body
            %v745 = vld [vmem:[%s743] sm:%s736]
            %746 = vst [vmem:[%s744] sm:%s736] %v745
          $region46: #{tpu_custom_call.1} parent=40 // loop_footer
            %s742 = sadd.s32 1, %s738
          $region47: #{tpu_custom_call.1} parent=40 // loop_footer_branch
            %737 = sbr.rel target = $region43
          $region48: #{tpu_custom_call.1} parent=40 // loop_exit
            _
        $region41: #{tpu_custom_call.1} parent=32 // pred_fallthru
          _
      $region33: #{tpu_custom_call.1} parent=28 // pred_fallthru
        _
      %761 = vnop
    $region29: #{tpu_custom_call.1} parent=1 // pred_fallthru
      _
    // Predicated region
    $region60: #{tpu_custom_call.1} parent=1 // pred_check
      _
    $region61: #{tpu_custom_call.1} parent=1 // pred_check_branch
      %763 = sbr.rel (0) target = $region63
    $region62: #{tpu_custom_call.1} parent=1 // pred_region
      _
    $region63: #{tpu_custom_call.1} parent=1 // pred_fallthru
      _
    %764 = vsyncpa [#allocation4], 1
    %765 = vsyncpa [#allocation6], 1

</llo_original>
